<compile_context>
chip_gen: v6e
topology: v6e:2x2x1
jax: 0.10.0
libtpu: 0.0.40
codegen_flags: <defaults>
</compile_context>

<pallas_src>
import functools

import jax
import jax.numpy as jnp
from jax.experimental import pallas as pl
from jax.experimental.pallas import tpu as pltpu


def _embed_kernel(idx_ref, table_hbm, out_ref, rows_vmem, sems, *, nsem):
    """Gather one block of token rows from the HBM table into VMEM.

    idx_ref:   SMEM int32[n_tokens_padded]  (scalar prefetch)
    table_hbm: HBM ref (vocab, d_pad)       (memory_space=pl.ANY)
    out_ref:   VMEM output block (T, d_pad)
    rows_vmem: VMEM scratch (T, d_pad)
    sems:      DMA semaphore array (nsem,)
    """
    blk = rows_vmem.shape[0]
    base = pl.program_id(0) * blk

    def gather_start(i):
        row = idx_ref[base + i]
        pltpu.make_async_copy(
            table_hbm.at[pl.ds(row, 1), :],
            rows_vmem.at[pl.ds(i, 1), :],
            sems.at[i % nsem],
        ).start()

    def gather_wait(i):
        # Only the semaphore + transfer size matter for the wait; row 0 is a
        # stand-in source of identical size.
        pltpu.make_async_copy(
            table_hbm.at[pl.ds(0, 1), :],
            rows_vmem.at[pl.ds(i, 1), :],
            sems.at[i % nsem],
        ).wait()

    # Keep up to `nsem` row gathers in flight: before re-using a semaphore
    # slot, wait on the copy issued `nsem` iterations ago.
    @pl.loop(0, blk)
    def _(i):
        @pl.when(i >= nsem)
        def _():
            gather_wait(i - nsem)

        gather_start(i)

    # Drain the tail copies.
    @pl.loop(blk - nsem, blk)
    def _(i):
        gather_wait(i)

    # One dense (T, d_pad) store -> single pipelined writeback DMA to HBM.
    out_ref[...] = rows_vmem[...]


def embedding_lookup(table: jax.Array, x: jax.Array,
                     *, block_tokens: int = 256, n_inflight: int = 8) -> jax.Array:
    """Pallas embedding gather.

    table: (vocab_len, d_model) float
    x:     (B, S) integer token ids
    returns (B, S, d_model) in table.dtype
    """
    B, S = x.shape
    vocab_len, d_model = table.shape
    n_tokens = B * S

    # Flatten + clamp ids (PyTorch would raise on OOB; we clamp defensively).
    idx = jnp.clip(x.reshape(n_tokens).astype(jnp.int32), 0, vocab_len - 1)

    # Lane-dense rows: pad feature dim up to a multiple of 128 so row DMAs and
    # the output stores are unmasked.  (Store the table pre-padded in prod.)
    d_pad = ((d_model + 127) // 128) * 128
    if d_pad != d_model:
        table = jnp.pad(table, ((0, 0), (0, d_pad - d_model)))

    # Token block: as large as block_tokens, 8-aligned (sublane multiple).
    blk = min(block_tokens, ((n_tokens + 7) // 8) * 8)
    blk = ((blk + 7) // 8) * 8
    n_pad_tokens = ((n_tokens + blk - 1) // blk) * blk
    if n_pad_tokens != n_tokens:
        idx = jnp.pad(idx, (0, n_pad_tokens - n_tokens))  # pad with row 0 (valid)

    nsem = max(1, min(n_inflight, blk))
    grid = (n_pad_tokens // blk,)

    # VMEM budget: 1x gather scratch + 2x double-buffered output block.
    itemsize = jnp.dtype(table.dtype).itemsize
    block_bytes = blk * d_pad * itemsize
    vmem_limit = int(min(max(6 * block_bytes, 32 << 20), 64 << 20))

    grid_spec = pltpu.PrefetchScalarGridSpec(
        num_scalar_prefetch=1,
        grid=grid,
        in_specs=[
            # Keep the full table in HBM; we gather rows manually.
            pl.BlockSpec(memory_space=pl.ANY),
        ],
        out_specs=pl.BlockSpec((blk, d_pad), lambda g, idx_ref: (g, 0)),
        scratch_shapes=[
            pltpu.VMEM((blk, d_pad), table.dtype),
            pltpu.SemaphoreType.DMA((nsem,)),
        ],
    )

    out_flat = pl.pallas_call(
        functools.partial(_embed_kernel, nsem=nsem),
        out_shape=jax.ShapeDtypeStruct((n_pad_tokens, d_pad), table.dtype),
        grid_spec=grid_spec,
        compiler_params=pltpu.CompilerParams(
            # Disjoint output blocks per step -> safe to shard across v7x TCs.
            dimension_semantics=("parallel",),
            vmem_limit_bytes=vmem_limit,
        ),
    )(idx, table)

    return out_flat[:n_tokens, :d_model].reshape(B, S, d_model)


if __name__ == "__main__":
    key = jax.random.PRNGKey(0)
    k_table, k_idx = jax.random.split(key)

    vocab_len = 64
    d_model = 32
    B, S = 2, 8

    # nn.Embedding default init: weights ~ N(0, 1)
    table = jax.random.normal(k_table, (vocab_len, d_model), dtype=jnp.float32)
    x = jax.random.randint(k_idx, (B, S), minval=0, maxval=vocab_len, dtype=jnp.int32)

    out = embedding_lookup(table, x)
    out = jax.block_until_ready(out)

    # Reference check against plain JAX gather.
    ref = jnp.take(table, x.reshape(-1), axis=0).reshape(B, S, d_model)
    assert out.shape == (B, S, d_model), out.shape
    assert out.dtype == jnp.float32, out.dtype
    assert jnp.allclose(out, ref), "mismatch vs reference gather"

    print("KERNEL_OK")
</pallas_src>

<mosaic_0001>
module attributes {stable_mosaic.version = 11 : i64} {
  func.func @_embed_kernel(%arg0: i32, %arg1: memref<16xi32, #tpu.memory_space<smem>>, %arg2: memref<64x128xf32, #tpu.memory_space<any>>, %arg3: memref<16x128xf32, #tpu.memory_space<vmem>>, %arg4: memref<16x128xf32, #tpu.memory_space<vmem>>, %arg5: memref<8x!tpu.dma_semaphore, #tpu.memory_space<semaphore_mem>>) attributes {dimension_semantics = [#tpu.dimension_semantics<parallel>], iteration_bounds = array<i64: 1>, scalar_prefetch = 1 : i64, scratch_operands = 2 : i64, tpu.core_type = #tpu.core_type<tc>, window_params = [{}, {transform_indices = @transform_1, window_bounds = array<i64: 16, 128>}]} {
    %c16_i32 = arith.constant 16 : i32
    %0 = arith.muli %arg0, %c16_i32 : i32
    %c0_i32 = arith.constant 0 : i32
    %c16_i32_0 = arith.constant 16 : i32
    %1 = arith.addi %c0_i32, %c16_i32_0 : i32
    %c1_i32 = arith.constant 1 : i32
    scf.for %arg6 = %c0_i32 to %1 step %c1_i32  : i32 {
      %c1_i32_8 = arith.constant 1 : i32
      %5 = arith.muli %arg6, %c1_i32_8 : i32
      %c0_i32_9 = arith.constant 0 : i32
      %6 = arith.addi %c0_i32_9, %5 : i32
      %c8_i32_10 = arith.constant 8 : i32
      %7 = arith.cmpi sge, %6, %c8_i32_10 : i32
      %8 = arith.extui %7 : i1 to i32
      %c0_i32_11 = arith.constant 0 : i32
      %9 = arith.cmpi ne, %8, %c0_i32_11 : i32
      scf.if %9 {
        %c8_i32_20 = arith.constant 8 : i32
        %27 = arith.subi %6, %c8_i32_20 : i32
        %c8_i32_21 = arith.constant 8 : i32
        %c0_i32_22 = arith.constant 0 : i32
        %28 = arith.cmpi eq, %c8_i32_21, %c0_i32_22 : i32
        %c1_i32_23 = arith.constant 1 : i32
        %29 = arith.select %28, %c1_i32_23, %c8_i32_21 : i32
        %30 = arith.remsi %27, %29 : i32
        %c0_i32_24 = arith.constant 0 : i32
        %31 = arith.cmpi ne, %30, %c0_i32_24 : i32
        %c0_i32_25 = arith.constant 0 : i32
        %32 = arith.cmpi slt, %30, %c0_i32_25 : i32
        %c0_i32_26 = arith.constant 0 : i32
        %33 = arith.cmpi slt, %29, %c0_i32_26 : i32
        %34 = arith.xori %32, %33 : i1
        %35 = arith.andi %34, %31 : i1
        %36 = arith.addi %30, %29 : i32
        %37 = arith.select %35, %36, %30 : i32
        %c0_i32_27 = arith.constant 0 : i32
        %c0_i32_28 = arith.constant 0 : i32
        %38 = tpu.memref_slice %arg2[%c0_i32_27, %c0_i32_28] : memref<64x128xf32, #tpu.memory_space<any>> -> memref<1x128xf32, #tpu.memory_space<any>>
        %c0_i32_29 = arith.constant 0 : i32
        %39 = tpu.memref_slice %arg4[%27, %c0_i32_29] : memref<16x128xf32, #tpu.memory_space<vmem>> -> memref<1x128xf32, #tpu.memory_space<vmem>>
        %40 = tpu.memref_slice %arg5[%37] : memref<8x!tpu.dma_semaphore, #tpu.memory_space<semaphore_mem>> -> memref<1x!tpu.dma_semaphore, #tpu.memory_space<semaphore_mem>>
        %41 = tpu.memref_squeeze %40 : memref<1x!tpu.dma_semaphore, #tpu.memory_space<semaphore_mem>> -> memref<!tpu.dma_semaphore, #tpu.memory_space<semaphore_mem>>
        tpu.wait_dma2 semaphore(%41 : memref<!tpu.dma_semaphore, #tpu.memory_space<semaphore_mem>>) src(%38 : memref<1x128xf32, #tpu.memory_space<any>>) dst(%39 : memref<1x128xf32, #tpu.memory_space<vmem>>)
      } else {
      }
      %10 = arith.addi %0, %6 : i32
      %11 = arith.index_cast %10 : i32 to index
      %12 = memref.load %arg1[%11] : memref<16xi32, #tpu.memory_space<smem>>
      %c8_i32_12 = arith.constant 8 : i32
      %c0_i32_13 = arith.constant 0 : i32
      %13 = arith.cmpi eq, %c8_i32_12, %c0_i32_13 : i32
      %c1_i32_14 = arith.constant 1 : i32
      %14 = arith.select %13, %c1_i32_14, %c8_i32_12 : i32
      %15 = arith.remsi %6, %14 : i32
      %c0_i32_15 = arith.constant 0 : i32
      %16 = arith.cmpi ne, %15, %c0_i32_15 : i32
      %c0_i32_16 = arith.constant 0 : i32
      %17 = arith.cmpi slt, %15, %c0_i32_16 : i32
      %c0_i32_17 = arith.constant 0 : i32
      %18 = arith.cmpi slt, %14, %c0_i32_17 : i32
      %19 = arith.xori %17, %18 : i1
      %20 = arith.andi %19, %16 : i1
      %21 = arith.addi %15, %14 : i32
      %22 = arith.select %20, %21, %15 : i32
      %c0_i32_18 = arith.constant 0 : i32
      %23 = tpu.memref_slice %arg2[%12, %c0_i32_18] : memref<64x128xf32, #tpu.memory_space<any>> -> memref<1x128xf32, #tpu.memory_space<any>>
      %c0_i32_19 = arith.constant 0 : i32
      %24 = tpu.memref_slice %arg4[%6, %c0_i32_19] : memref<16x128xf32, #tpu.memory_space<vmem>> -> memref<1x128xf32, #tpu.memory_space<vmem>>
      %25 = tpu.memref_slice %arg5[%22] : memref<8x!tpu.dma_semaphore, #tpu.memory_space<semaphore_mem>> -> memref<1x!tpu.dma_semaphore, #tpu.memory_space<semaphore_mem>>
      %26 = tpu.memref_squeeze %25 : memref<1x!tpu.dma_semaphore, #tpu.memory_space<semaphore_mem>> -> memref<!tpu.dma_semaphore, #tpu.memory_space<semaphore_mem>>
      tpu.enqueue_dma source(%23 : memref<1x128xf32, #tpu.memory_space<any>>) target(%24 : memref<1x128xf32, #tpu.memory_space<vmem>>) target_semaphore(%26 : memref<!tpu.dma_semaphore, #tpu.memory_space<semaphore_mem>>)
    }
    %c16_i32_1 = arith.constant 16 : i32
    %c0_i32_2 = arith.constant 0 : i32
    %c8_i32 = arith.constant 8 : i32
    %2 = arith.addi %c0_i32_2, %c8_i32 : i32
    %c1_i32_3 = arith.constant 1 : i32
    scf.for %arg6 = %c0_i32_2 to %2 step %c1_i32_3  : i32 {
      %c1_i32_8 = arith.constant 1 : i32
      %5 = arith.muli %arg6, %c1_i32_8 : i32
      %c8_i32_9 = arith.constant 8 : i32
      %6 = arith.addi %c8_i32_9, %5 : i32
      %c8_i32_10 = arith.constant 8 : i32
      %c0_i32_11 = arith.constant 0 : i32
      %7 = arith.cmpi eq, %c8_i32_10, %c0_i32_11 : i32
      %c1_i32_12 = arith.constant 1 : i32
      %8 = arith.select %7, %c1_i32_12, %c8_i32_10 : i32
      %9 = arith.remsi %6, %8 : i32
      %c0_i32_13 = arith.constant 0 : i32
      %10 = arith.cmpi ne, %9, %c0_i32_13 : i32
      %c0_i32_14 = arith.constant 0 : i32
      %11 = arith.cmpi slt, %9, %c0_i32_14 : i32
      %c0_i32_15 = arith.constant 0 : i32
      %12 = arith.cmpi slt, %8, %c0_i32_15 : i32
      %13 = arith.xori %11, %12 : i1
      %14 = arith.andi %13, %10 : i1
      %15 = arith.addi %9, %8 : i32
      %16 = arith.select %14, %15, %9 : i32
      %c0_i32_16 = arith.constant 0 : i32
      %c0_i32_17 = arith.constant 0 : i32
      %17 = tpu.memref_slice %arg2[%c0_i32_16, %c0_i32_17] : memref<64x128xf32, #tpu.memory_space<any>> -> memref<1x128xf32, #tpu.memory_space<any>>
      %c0_i32_18 = arith.constant 0 : i32
      %18 = tpu.memref_slice %arg4[%6, %c0_i32_18] : memref<16x128xf32, #tpu.memory_space<vmem>> -> memref<1x128xf32, #tpu.memory_space<vmem>>
      %19 = tpu.memref_slice %arg5[%16] : memref<8x!tpu.dma_semaphore, #tpu.memory_space<semaphore_mem>> -> memref<1x!tpu.dma_semaphore, #tpu.memory_space<semaphore_mem>>
      %20 = tpu.memref_squeeze %19 : memref<1x!tpu.dma_semaphore, #tpu.memory_space<semaphore_mem>> -> memref<!tpu.dma_semaphore, #tpu.memory_space<semaphore_mem>>
      tpu.wait_dma2 semaphore(%20 : memref<!tpu.dma_semaphore, #tpu.memory_space<semaphore_mem>>) src(%17 : memref<1x128xf32, #tpu.memory_space<any>>) dst(%18 : memref<1x128xf32, #tpu.memory_space<vmem>>)
    }
    %c8_i32_4 = arith.constant 8 : i32
    %c0 = arith.constant 0 : index
    %c0_5 = arith.constant 0 : index
    %3 = vector.load %arg4[%c0, %c0_5] : memref<16x128xf32, #tpu.memory_space<vmem>>, vector<16x128xf32>
    %c0_6 = arith.constant 0 : index
    %c0_7 = arith.constant 0 : index
    %4 = vector.load %arg3[%c0_6, %c0_7] : memref<16x128xf32, #tpu.memory_space<vmem>>, vector<16x128xf32>
    tpu.vector_store %arg3[%c0_6, %c0_7], %3 {strides = array<i32>} : memref<16x128xf32, #tpu.memory_space<vmem>>, vector<16x128xf32>,
    return
  }
  func.func @transform_1(%arg0: i32, %arg1: memref<16xi32, #tpu.memory_space<smem>>) -> (i32, i32) {
    %c0_i32 = arith.constant 0 : i32
    %c0_i32_0 = arith.constant 0 : i32
    return %arg0, %c0_i32 : i32, i32
  }
}

</mosaic_0001>

<llo_original>
// kernel: tpu_custom_call.1
$region0: #{tpu_custom_call.1}
  #allocation0 [shape = 'u32[]', space=smem, size = 0x4, offset = 0x4, fixed_abs, tag = 'smem constant byte address 0x4 - core index']
  #allocation1 [shape = 'u32[144,128]{1,0:T(1,128)}', space=vmem, size = 0x12000, scoped, tag = 'internal scratch']
  #allocation2 [shape = 'f32[16,128]{1,0:T(8,128)}', space=vmem, size = 0x2000, scoped, tag = 'scratch operand']
  #allocation3 [shape = 's32[8]{0}', space=sflag, size = 0x20, scoped, tag = 'scratch operand']
  #allocation4 [shape = 's32[1]{0}', space=sflag, size = 0x4, scoped, tag = 'scoped memory for tpu_custom_call.1']
  #allocation5 [shape = 'u8[512]{0}', space=smem, size = 0x200, scoped, tag = 'prefetched SMEM operand 0']
  #allocation8 [shape = 's32[]', space=sflag, size = 0x4, offset = 0, fixed_abs, tag = 'sflag constant byte address 0x0 - dummy sync flag']
  #allocation9 [shape = 's32[]', space=sflag, size = 0x4, offset = 0, fixed_abs, tag = 'sflag constant byte address 0x0 - dummy sync flag']
  #allocation10 [shape = 'u32[]', space=smem, size = 0x4, offset = 0x44, fixed_abs, tag = 'smem constant byte address 0x44 - assertion arg 0']
  #allocation11 [shape = 'u32[]', space=smem, size = 0x4, offset = 0x48, fixed_abs, tag = 'smem constant byte address 0x48 - assertion arg 1']
  %s0 = inlined_call_operand.hbm [shape: s32[16], index: 0, kind: input, shape index: {}]
  %s1 = inlined_call_operand.hbm [shape: f32[64,128], index: 1, kind: input, shape index: {}]
  %s2 = inlined_call_operand.hbm [shape: f32[16,128], index: 2, kind: output, shape index: {}]
  %s3 = sld [smem:[#allocation0]]
  $region32: #{tpu_custom_call.1} parent=0
    _
  %s5 = ssub.s32 1, %s3
  %s6 = scalar_select 0, %s5, %s3
  %8 = dma.hbm_to_smem %s0, 16, [#allocation5], [#allocation4]
  %9 = dma.done [#allocation4], 16
  %10 = sfence
  $region1: #{tpu_custom_call.1} parent=0
    #allocation6 [shape = 'u8[8192]{0}', space=vmem, size = 0x2000, scoped, tag = 'output window, operand 0, single buffered']
    #allocation7 [shape = 's32[1]{0}', space=sflag, size = 0x4, scoped, tag = 'scoped memory for tpu_custom_call.1']
    %11 = vsyncpa [#allocation7], 0
    %s12 = smul.u32 0, 16
    loop: start=0, step=1, limit=16
    $region2: #{tpu_custom_call.1} parent=1 // loop_pre_header
      _
    $region3: #{tpu_custom_call.1} parent=1 // loop_header
      %s14 = sphi 0, %s18
      %p15 = scmp.ge.s32.totalorder %s14, 16
    $region4: #{tpu_custom_call.1} parent=1 // loop_header_branch
      %17 = sbr.rel (%p15) target = $region8
    $region5: #{tpu_custom_call.1} parent=1 // loop_body
      %p19 = scmp.ge.s32.totalorder %s14, 8
      // Predicated region
      $region9: #{tpu_custom_call.1} parent=5 // pred_check
        %p20 = pneg %p19
      $region10: #{tpu_custom_call.1} parent=5 // pred_check_branch
        %22 = sbr.rel (%p20) target = $region12
      $region11: #{tpu_custom_call.1} parent=5 // pred_region
        %s23 = ssub.s32 %s14, 8
        %p24 = scmp.lt.s32.totalorder %s23, 0
        %s25 = ssub.s32 0, %s23
        %s26 = scalar_select %p24, %s25, %s23
        %s27 = sand.u32 %s26, 7
        %s28 = ssub.s32 0, %s27
        %s29 = scalar_select %p24, %s28, %s27
        %p30 = scmp.ne.s32.totalorder %s29, 0
        %p31 = scmp.lt.s32.totalorder %s29, 0
        %p32 = pnand %p31, %p30
        %p33 = pneg %p32
        %s34 = sadd.s32 %s29, 8
        %s35 = scalar_select %p33, %s34, %s29
        %s36 = scalar_lea.sflag [#allocation3], %s35
        %s37 = smul.u32 1, 1
        %s38 = sshll.u32 %s37, 4
        %39 = dma.done %s36, %s38
      $region12: #{tpu_custom_call.1} parent=5 // pred_fallthru
        _
      %s40 = sadd.s32 %s12, %s14
      %s41 = sld [smem:[#allocation5 + %s40]]
      %p42 = scmp.lt.s32.totalorder %s14, 0
      %s43 = ssub.s32 0, %s14
      %s44 = scalar_select %p42, %s43, %s14
      %s45 = sand.u32 %s44, 7
      %s46 = ssub.s32 0, %s45
      %s47 = scalar_select %p42, %s46, %s45
      %p48 = scmp.ne.s32.totalorder %s47, 0
      %p49 = scmp.lt.s32.totalorder %s47, 0
      %p50 = pnand %p49, %p48
      %p51 = pneg %p50
      %s52 = sadd.s32 %s47, 8
      %s53 = scalar_select %p51, %s52, %s47
      %s54 = smul.addr %s41, 16
      %s55 = scalar_lea.hbm %s1, %s54
      %s56 = scalar_lea.vmem [#allocation2], %s14
      %s57 = scalar_lea.sflag [#allocation3], %s53
      // Predicated region
      $region13: #{tpu_custom_call.1} parent=5 // pred_check
        _
      $region14: #{tpu_custom_call.1} parent=5 // pred_check_branch
        %59 = sbr.rel target = $region16
      $region15: #{tpu_custom_call.1} parent=5 // pred_region
        %60 = sst [smem:[#allocation10]] [#allocation9]
        %61 = sst [smem:[#allocation11]] [#allocation8]
      $region16: #{tpu_custom_call.1} parent=5 // pred_fallthru
        _
      %63 = shalt.err (0)
      %s65 = sshll.u32 %s56, 4
      %s66 = int_to_ptr.vmem [resolvable:$true] %s65
      %68 = dma.hbm_to_vmem [thread:$0]  %s55, 16, %s66, %s57
    $region6: #{tpu_custom_call.1} parent=1 // loop_footer
      %s18 = sadd.s32 1, %s14
    $region7: #{tpu_custom_call.1} parent=1 // loop_footer_branch
      %13 = sbr.rel target = $region3
    $region8: #{tpu_custom_call.1} parent=1 // loop_exit
      _
    loop: start=0, step=1, limit=8
    $region17: #{tpu_custom_call.1} parent=1 // loop_pre_header
      _
    $region18: #{tpu_custom_call.1} parent=1 // loop_header
      %s70 = sphi 0, %s74
      %p71 = scmp.ge.s32.totalorder %s70, 8
    $region19: #{tpu_custom_call.1} parent=1 // loop_header_branch
      %73 = sbr.rel (%p71) target = $region23
    $region20: #{tpu_custom_call.1} parent=1 // loop_body
      %s75 = sadd.s32 %s70, 8
      %p76 = scmp.lt.s32.totalorder %s75, 0
      %s77 = ssub.s32 0, %s75
      %s78 = scalar_select %p76, %s77, %s75
      %s79 = sand.u32 %s78, 7
      %s80 = ssub.s32 0, %s79
      %s81 = scalar_select %p76, %s80, %s79
      %p82 = scmp.ne.s32.totalorder %s81, 0
      %p83 = scmp.lt.s32.totalorder %s81, 0
      %p84 = pnand %p83, %p82
      %p85 = pneg %p84
      %s86 = sadd.s32 %s81, 8
      %s87 = scalar_select %p85, %s86, %s81
      %s88 = scalar_lea.sflag [#allocation3], %s87
      %s89 = smul.u32 1, 1
      %s90 = sshll.u32 %s89, 4
      %91 = dma.done %s88, %s90
    $region21: #{tpu_custom_call.1} parent=1 // loop_footer
      %s74 = sadd.s32 1, %s70
    $region22: #{tpu_custom_call.1} parent=1 // loop_footer_branch
      %69 = sbr.rel target = $region18
    $region23: #{tpu_custom_call.1} parent=1 // loop_exit
      _
    %v92 = vld [vmem:[#allocation2] sm:$0xff]
    %v93 = vld [vmem:[#allocation2 + $0x8] sm:$0xff]
    %94 = vst [vmem:[#allocation6] sm:$0xff] %v92
    %95 = vst [vmem:[#allocation6 + $0x8] sm:$0xff] %v93
    // Predicated region
    $region24: #{tpu_custom_call.1} parent=1 // pred_check
      _
    $region25: #{tpu_custom_call.1} parent=1 // pred_check_branch
      %97 = sbr.rel (0) target = $region27
    $region26: #{tpu_custom_call.1} parent=1 // pred_region
      %s99 = ssub.s32 256, 256
      %100 = vsyncadd [#allocation7], %s99
      %s101 = sshll.u32 [#allocation6], 4
      %s102 = int_to_ptr.vmem [resolvable:$true] %s101
      %107 = dma.vmem_to_hbm [thread:$0]  %s102, 256, %s2, [#allocation7], 128, 128, 8
    $region27: #{tpu_custom_call.1} parent=1 // pred_fallthru
      _
    // Predicated region
    $region28: #{tpu_custom_call.1} parent=1 // pred_check
      _
    $region29: #{tpu_custom_call.1} parent=1 // pred_check_branch
      %109 = sbr.rel (0) target = $region31
    $region30: #{tpu_custom_call.1} parent=1 // pred_region
      %110 = dma.done [#allocation7], 256
    $region31: #{tpu_custom_call.1} parent=1 // pred_fallthru
      _
    %111 = vsyncpa [#allocation7], 1
  %112 = vsyncmov [#allocation3]
  %s113 = vpop.sfrf %112
  %p114 = scmp.eq.s32.totalorder %s113, 0
  %p115 = pneg %p114
  %117 = shalt.err (%p115)
  %s118 = scalar_lea.sflag [#allocation3], 1
  %119 = vsyncmov %s118
  %s120 = vpop.sfrf %119
  %p121 = scmp.eq.s32.totalorder %s120, 0
  %p122 = pneg %p121
  %124 = shalt.err (%p122)
  %s125 = scalar_lea.sflag [#allocation3], 2
  %126 = vsyncmov %s125
  %s127 = vpop.sfrf %126
  %p128 = scmp.eq.s32.totalorder %s127, 0
  %p129 = pneg %p128
  %131 = shalt.err (%p129)
  %s132 = scalar_lea.sflag [#allocation3], 3
  %133 = vsyncmov %s132
  %s134 = vpop.sfrf %133
  %p135 = scmp.eq.s32.totalorder %s134, 0
  %p136 = pneg %p135
  %138 = shalt.err (%p136)
  %s139 = scalar_lea.sflag [#allocation3], 4
  %140 = vsyncmov %s139
  %s141 = vpop.sfrf %140
  %p142 = scmp.eq.s32.totalorder %s141, 0
  %p143 = pneg %p142
  %145 = shalt.err (%p143)
  %s146 = scalar_lea.sflag [#allocation3], 5
  %147 = vsyncmov %s146
  %s148 = vpop.sfrf %147
  %p149 = scmp.eq.s32.totalorder %s148, 0
  %p150 = pneg %p149
  %152 = shalt.err (%p150)
  %s153 = scalar_lea.sflag [#allocation3], 6
  %154 = vsyncmov %s153
  %s155 = vpop.sfrf %154
  %p156 = scmp.eq.s32.totalorder %s155, 0
  %p157 = pneg %p156
  %159 = shalt.err (%p157)
  %s160 = scalar_lea.sflag [#allocation3], 7
  %161 = vsyncmov %s160
  %s162 = vpop.sfrf %161
  %p163 = scmp.eq.s32.totalorder %s162, 0
  %p164 = pneg %p163
  %166 = shalt.err (%p164)

</llo_original>
